<compile_context>
chip_gen: v7x
topology: tpu7x:2x2x1
jax: 0.10.0
libtpu: 0.0.40
codegen_flags: <defaults>
</compile_context>

<pallas_src>
import functools

import jax
import jax.numpy as jnp
from jax.experimental import pallas as pl
from jax.experimental.pallas import tpu as pltpu

_HIDDEN = 256
_LANE = 128
_SUBLANE = 8


def _round_up(n: int, m: int) -> int:
    return ((n + m - 1) // m) * m


def _next_pow2(n: int) -> int:
    return 1 << (max(1, n) - 1).bit_length()


def _actor_kernel(x_ref, w1_ref, w23_ref, wf_ref, b_ref, o_ref, *,
                  action_range: float, hid_pad: int, act_pad: int):
    """One batch tile of the fused MLP.

    x tile and all weights are bf16 (HBM-traffic / MXU win); the matmul
    accumulator, bias add, ReLU and tanh stay in f32 (v5e has no bf16
    VPU/EUP). Activations are carried between layers in bf16.
    """

    def dense(h_bf16, w_bf16, bias_f32):
        acc = jnp.dot(h_bf16, w_bf16, preferred_element_type=jnp.float32)
        return acc + bias_f32

    h = jnp.maximum(dense(x_ref[...], w1_ref[...], b_ref[0:1, :hid_pad]),
                    0.0).astype(jnp.bfloat16)
    h = jnp.maximum(dense(h, w23_ref[0], b_ref[1:2, :hid_pad]),
                    0.0).astype(jnp.bfloat16)
    h = jnp.maximum(dense(h, w23_ref[1], b_ref[2:3, :hid_pad]),
                    0.0).astype(jnp.bfloat16)
    y = dense(h, wf_ref[...], b_ref[3:4, :act_pad])
    o_ref[...] = action_range * jnp.tanh(y)


def prepare_actor_params(params):
    """One-time conversion of (in,out)-layout f32 params into padded,
    consolidated, bf16 weight tensors + one f32 bias slab. The per-call
    forward path never re-pads weights."""
    (w1, b1), (w2, b2), (w3, b3), (wf, bf) = params
    d_in, hidden = w1.shape
    act_dim = wf.shape[1]
    assert hidden == _HIDDEN and w2.shape == (hidden, hidden) == w3.shape

    Dp = _round_up(d_in, _LANE)
    Hp = _round_up(hidden, _LANE)
    Ap = _round_up(act_dim, _LANE)
    BW = max(Hp, Ap)

    def pad2(a, r, c):
        return jnp.pad(a, ((0, r - a.shape[0]), (0, c - a.shape[1])))

    w1p = pad2(w1, Dp, Hp).astype(jnp.bfloat16)
    w23p = jnp.stack([pad2(w2, Hp, Hp), pad2(w3, Hp, Hp)]).astype(jnp.bfloat16)
    wfp = pad2(wf, Hp, Ap).astype(jnp.bfloat16)
    bias = jnp.stack([
        pad2(b1.reshape(1, -1).astype(jnp.float32), 1, BW)[0],
        pad2(b2.reshape(1, -1).astype(jnp.float32), 1, BW)[0],
        pad2(b3.reshape(1, -1).astype(jnp.float32), 1, BW)[0],
        pad2(bf.reshape(1, -1).astype(jnp.float32), 1, BW)[0],
    ])

    arrays = jax.device_put((w1p, w23p, wfp, bias))
    dims = dict(d_in=d_in, act_dim=act_dim, Dp=Dp, Hp=Hp, Ap=Ap, BW=BW)
    return arrays, dims


def _device_kind() -> str:
    try:
        return jax.devices()[0].device_kind.lower()
    except Exception:  # pragma: no cover - defensive, e.g. no devices visible
        return "unknown"


def _select_tb(Bp: int, kind: str) -> int:
    """Generation-aware batch-tile size.

    v5e: M=128 already fills the 4x128^2 MXU -> TB=128.
    v6e: 2x256^2 MXU -> TB=256 fills the M dim and halves grid steps.
    v7x: like v6e, but keep >=2 grid steps so both TensorCores engage.
    """
    is_v5 = "v5" in kind
    is_v7 = ("v7" in kind) or ("7x" in kind)
    tb_max = 128 if is_v5 else 256
    if Bp <= tb_max:
        return Bp
    if is_v7:
        return min(tb_max, max(128, Bp // 2))
    return tb_max


def make_actor_forward(params, *, action_range: float):
    """Returns forward(x) with pre-padded, bf16, device-resident params and a
    bucketed batch dimension (no recompiles for varying batch sizes)."""
    (w1p, w23p, wfp, bias), dims = prepare_actor_params(params)
    d_in, act_dim = dims["d_in"], dims["act_dim"]
    Dp, Hp, Ap, BW = dims["Dp"], dims["Hp"], dims["Ap"], dims["BW"]
    kind = _device_kind()

    kernel = functools.partial(_actor_kernel,
                               action_range=float(action_range),
                               hid_pad=Hp, act_pad=Ap)

    @jax.jit
    def _fwd(xp, w1p, w23p, wfp, bias):
        Bp = xp.shape[0]
        TB = _select_tb(Bp, kind)

        return pl.pallas_call(
            kernel,
            out_shape=jax.ShapeDtypeStruct((Bp, Ap), jnp.float32),
            grid=(Bp // TB,),
            in_specs=[
                pl.BlockSpec((TB, Dp), lambda i: (i, 0)),        # x tile (moves, bf16)
                pl.BlockSpec((Dp, Hp), lambda i: (0, 0)),        # L1 weight (resident)
                pl.BlockSpec((2, Hp, Hp), lambda i: (0, 0, 0)),  # L2/L3 weights stacked
                pl.BlockSpec((Hp, Ap), lambda i: (0, 0)),        # fc weight
                pl.BlockSpec((4, BW), lambda i: (0, 0)),         # all biases, one slab
            ],
            out_specs=pl.BlockSpec((TB, Ap), lambda i: (i, 0)),
            compiler_params=pltpu.CompilerParams(
                dimension_semantics=("parallel",),
                vmem_limit_bytes=8 << 20,
            ),
        )(xp, w1p, w23p, wfp, bias)

    def forward(x):
        assert x.shape[1] == d_in, (x.shape, d_in)
        B = x.shape[0]
        # Bucket B to {8, 16, 32, 64, 128, 256, ...} so the jitted pallas_call
        # only ever sees a few distinct shapes (no per-batch-size recompiles).
        Bp = max(_SUBLANE, _next_pow2(B))
        # Pad + cast x to bf16 here: halves the streamed x-tile DMA; numerics
        # are identical (the kernel fed x to the MXU as bf16 anyway).
        xp = jnp.pad(x.astype(jnp.float32),
                     ((0, Bp - B), (0, Dp - d_in))).astype(jnp.bfloat16)
        out = _fwd(xp, w1p, w23p, wfp, bias)
        return out[:B, :act_dim]

    return forward


def init_actor_params(key, obs_dim, goal_dim, action_dim, zero_last):
    """Deterministic init mirroring nn.Linear's default U(-1/sqrt(fan_in), ...).
    Weights stored as (in_features, out_features)."""
    hidden = _HIDDEN
    dims = [(obs_dim + goal_dim, hidden), (hidden, hidden), (hidden, hidden),
            (hidden, action_dim)]
    params = []
    for (fan_in, fan_out) in dims:
        key, kw, kb = jax.random.split(key, 3)
        bound = 1.0 / jnp.sqrt(jnp.float32(fan_in))
        w = jax.random.uniform(kw, (fan_in, fan_out), jnp.float32, -bound, bound)
        b = jax.random.uniform(kb, (fan_out,), jnp.float32, -bound, bound)
        params.append((w, b))
    if zero_last:
        wf, bf = params[-1]
        params[-1] = (jnp.zeros_like(wf), jnp.zeros_like(bf))
    return params


if __name__ == "__main__":
    # Shapes consistent with fetch-reach: obs_dim=10, goal_dim=3, action_dim=4.
    obs_dim, goal_dim, action_dim = 10, 3, 4
    action_range = 1.0
    zero_last = False

    key = jax.random.PRNGKey(0)
    params = init_actor_params(key, obs_dim, goal_dim, action_dim, zero_last)
    forward = make_actor_forward(params, action_range=action_range)

    # Reference 1: mirrors the kernel numerics exactly (bf16 MXU operands /
    # bf16 carried activations, f32 accumulation & elementwise) -> tight tol.
    def ref_bf16(x, params):
        def dense(h, w, b):
            return jnp.dot(h.astype(jnp.bfloat16), w.astype(jnp.bfloat16),
                           preferred_element_type=jnp.float32) + b
        (w1, b1), (w2, b2), (w3, b3), (wf, bf) = params
        h = jnp.maximum(dense(x, w1, b1), 0.0)
        h = jnp.maximum(dense(h, w2, b2), 0.0)
        h = jnp.maximum(dense(h, w3, b3), 0.0)
        return action_range * jnp.tanh(dense(h, wf, bf))

    # Reference 2: pure-f32 PyTorch semantics -> loose tolerance (bf16 weights).
    def ref_f32(x, params):
        (w1, b1), (w2, b2), (w3, b3), (wf, bf) = params
        h = jnp.maximum(x @ w1 + b1, 0.0)
        h = jnp.maximum(h @ w2 + b2, 0.0)
        h = jnp.maximum(h @ w3 + b3, 0.0)
        return action_range * jnp.tanh(h @ wf + bf)

    def check(batch, kx):
        x = jax.random.normal(kx, (batch, obs_dim + goal_dim), jnp.float32)
        out = jax.block_until_ready(forward(x))
        assert out.shape == (batch, action_dim), out.shape
        e1 = ref_bf16(x, params)
        e2 = ref_f32(x, params)
        assert jnp.allclose(out, e1, atol=2e-3, rtol=1e-3), (
            float(jnp.max(jnp.abs(out - e1))))
        assert jnp.allclose(out, e2, atol=5e-2, rtol=5e-2), (
            float(jnp.max(jnp.abs(out - e2))))

    key, k1, k2 = jax.random.split(key, 3)
    check(2, k1)     # tiny serving batch (single grid step)
    check(300, k2)   # bucketed to 512 -> multi-tile grid, exercises tiling

    print("KERNEL_OK")
</pallas_src>

<mosaic_0001>
module attributes {stable_mosaic.version = 11 : i64} {
  func.func @_actor_kernel(%arg0: i32, %arg1: memref<8x128xbf16, #tpu.memory_space<vmem>>, %arg2: memref<128x256xbf16, #tpu.memory_space<vmem>>, %arg3: memref<2x256x256xbf16, #tpu.memory_space<vmem>>, %arg4: memref<256x128xbf16, #tpu.memory_space<vmem>>, %arg5: memref<4x256xf32, #tpu.memory_space<vmem>>, %arg6: memref<8x128xf32, #tpu.memory_space<vmem>>) attributes {dimension_semantics = [#tpu.dimension_semantics<parallel>], iteration_bounds = array<i64: 1>, scalar_prefetch = 0 : i64, scratch_operands = 0 : i64, tpu.core_type = #tpu.core_type<tc>, window_params = [{transform_indices = @transform_0, window_bounds = array<i64: 8, 128>}, {pipeline_mode = #tpu.pipeline_mode<synchronous>, transform_indices = @transform_1, window_bounds = array<i64: 128, 256>}, {pipeline_mode = #tpu.pipeline_mode<synchronous>, transform_indices = @transform_2, window_bounds = array<i64: 2, 256, 256>}, {pipeline_mode = #tpu.pipeline_mode<synchronous>, transform_indices = @transform_3, window_bounds = array<i64: 256, 128>}, {pipeline_mode = #tpu.pipeline_mode<synchronous>, transform_indices = @transform_4, window_bounds = array<i64: 4, 256>}, {transform_indices = @transform_5, window_bounds = array<i64: 8, 128>}]} {
    %c0 = arith.constant 0 : index
    %c0_0 = arith.constant 0 : index
    %0 = vector.load %arg1[%c0, %c0_0] : memref<8x128xbf16, #tpu.memory_space<vmem>>, vector<8x128xbf16>
    %c0_1 = arith.constant 0 : index
    %c0_2 = arith.constant 0 : index
    %1 = vector.load %arg2[%c0_1, %c0_2] : memref<128x256xbf16, #tpu.memory_space<vmem>>, vector<128x256xbf16>
    %c0_3 = arith.constant 0 : index
    %c0_4 = arith.constant 0 : index
    %2 = vector.load %arg5[%c0_3, %c0_4] : memref<4x256xf32, #tpu.memory_space<vmem>>, vector<1x256xf32>
    %cst = arith.constant dense<0.000000e+00> : vector<8x256xf32>
    %3 = tpu.matmul %0, %1, %cst {dimension_numbers = #tpu.dot_dimension_numbers<[1], [0], [0], [1], [0, 0, 1, 1], [], []>} : vector<8x128xbf16>, vector<128x256xbf16>, vector<8x256xf32> -> vector<8x256xf32>
    %4 = vector.broadcast %2 : vector<1x256xf32> to vector<8x256xf32>
    %5 = arith.addf %3, %4 : vector<8x256xf32>
    %cst_5 = arith.constant 0.000000e+00 : f32
    %6 = vector.broadcast %cst_5 : f32 to vector<8x256xf32>
    %7 = arith.maximumf %5, %6 : vector<8x256xf32>
    %8 = arith.truncf %7 : vector<8x256xf32> to vector<8x256xbf16>
    %c0_6 = arith.constant 0 : index
    %c0_7 = arith.constant 0 : index
    %c0_8 = arith.constant 0 : index
    %9 = vector.load %arg3[%c0_6, %c0_7, %c0_8] : memref<2x256x256xbf16, #tpu.memory_space<vmem>>, vector<1x256x256xbf16>
    %10 = vector.shape_cast %9 : vector<1x256x256xbf16> to vector<256x256xbf16>
    %c1 = arith.constant 1 : index
    %c0_9 = arith.constant 0 : index
    %11 = vector.load %arg5[%c1, %c0_9] : memref<4x256xf32, #tpu.memory_space<vmem>>, vector<1x256xf32>
    %cst_10 = arith.constant dense<0.000000e+00> : vector<8x256xf32>
    %12 = tpu.matmul %8, %10, %cst_10 {dimension_numbers = #tpu.dot_dimension_numbers<[1], [0], [0], [1], [0, 0, 1, 1], [], []>} : vector<8x256xbf16>, vector<256x256xbf16>, vector<8x256xf32> -> vector<8x256xf32>
    %13 = vector.broadcast %11 : vector<1x256xf32> to vector<8x256xf32>
    %14 = arith.addf %12, %13 : vector<8x256xf32>
    %cst_11 = arith.constant 0.000000e+00 : f32
    %15 = vector.broadcast %cst_11 : f32 to vector<8x256xf32>
    %16 = arith.maximumf %14, %15 : vector<8x256xf32>
    %17 = arith.truncf %16 : vector<8x256xf32> to vector<8x256xbf16>
    %c1_12 = arith.constant 1 : index
    %c0_13 = arith.constant 0 : index
    %c0_14 = arith.constant 0 : index
    %18 = vector.load %arg3[%c1_12, %c0_13, %c0_14] : memref<2x256x256xbf16, #tpu.memory_space<vmem>>, vector<1x256x256xbf16>
    %19 = vector.shape_cast %18 : vector<1x256x256xbf16> to vector<256x256xbf16>
    %c2 = arith.constant 2 : index
    %c0_15 = arith.constant 0 : index
    %20 = vector.load %arg5[%c2, %c0_15] : memref<4x256xf32, #tpu.memory_space<vmem>>, vector<1x256xf32>
    %cst_16 = arith.constant dense<0.000000e+00> : vector<8x256xf32>
    %21 = tpu.matmul %17, %19, %cst_16 {dimension_numbers = #tpu.dot_dimension_numbers<[1], [0], [0], [1], [0, 0, 1, 1], [], []>} : vector<8x256xbf16>, vector<256x256xbf16>, vector<8x256xf32> -> vector<8x256xf32>
    %22 = vector.broadcast %20 : vector<1x256xf32> to vector<8x256xf32>
    %23 = arith.addf %21, %22 : vector<8x256xf32>
    %cst_17 = arith.constant 0.000000e+00 : f32
    %24 = vector.broadcast %cst_17 : f32 to vector<8x256xf32>
    %25 = arith.maximumf %23, %24 : vector<8x256xf32>
    %26 = arith.truncf %25 : vector<8x256xf32> to vector<8x256xbf16>
    %c0_18 = arith.constant 0 : index
    %c0_19 = arith.constant 0 : index
    %27 = vector.load %arg4[%c0_18, %c0_19] : memref<256x128xbf16, #tpu.memory_space<vmem>>, vector<256x128xbf16>
    %c3 = arith.constant 3 : index
    %c0_20 = arith.constant 0 : index
    %28 = vector.load %arg5[%c3, %c0_20] : memref<4x256xf32, #tpu.memory_space<vmem>>, vector<1x128xf32>
    %cst_21 = arith.constant dense<0.000000e+00> : vector<8x128xf32>
    %29 = tpu.matmul %26, %27, %cst_21 {dimension_numbers = #tpu.dot_dimension_numbers<[1], [0], [0], [1], [0, 0, 1, 1], [], []>} : vector<8x256xbf16>, vector<256x128xbf16>, vector<8x128xf32> -> vector<8x128xf32>
    %30 = vector.broadcast %28 : vector<1x128xf32> to vector<8x128xf32>
    %31 = arith.addf %29, %30 : vector<8x128xf32>
    %32 = math.tanh %31 : vector<8x128xf32>
    %cst_22 = arith.constant 1.000000e+00 : f32
    %33 = vector.broadcast %cst_22 : f32 to vector<8x128xf32>
    %34 = arith.mulf %33, %32 : vector<8x128xf32>
    %c0_23 = arith.constant 0 : index
    %c0_24 = arith.constant 0 : index
    %35 = vector.load %arg6[%c0_23, %c0_24] : memref<8x128xf32, #tpu.memory_space<vmem>>, vector<8x128xf32>
    tpu.vector_store %arg6[%c0_23, %c0_24], %34 {strides = array<i32>} : memref<8x128xf32, #tpu.memory_space<vmem>>, vector<8x128xf32>,
    return
  }
  func.func @transform_0(%arg0: i32) -> (i32, i32) {
    %c0_i32 = arith.constant 0 : i32
    %c0_i32_0 = arith.constant 0 : i32
    return %arg0, %c0_i32 : i32, i32
  }
  func.func @transform_1(%arg0: i32) -> (i32, i32) {
    %c0_i32 = arith.constant 0 : i32
    %c0_i32_0 = arith.constant 0 : i32
    %c0_i32_1 = arith.constant 0 : i32
    return %c0_i32, %c0_i32_0 : i32, i32
  }
  func.func @transform_2(%arg0: i32) -> (i32, i32, i32) {
    %c0_i32 = arith.constant 0 : i32
    %c0_i32_0 = arith.constant 0 : i32
    %c0_i32_1 = arith.constant 0 : i32
    %c0_i32_2 = arith.constant 0 : i32
    return %c0_i32, %c0_i32_0, %c0_i32_1 : i32, i32, i32
  }
  func.func @transform_3(%arg0: i32) -> (i32, i32) {
    %c0_i32 = arith.constant 0 : i32
    %c0_i32_0 = arith.constant 0 : i32
    %c0_i32_1 = arith.constant 0 : i32
    return %c0_i32, %c0_i32_0 : i32, i32
  }
  func.func @transform_4(%arg0: i32) -> (i32, i32) {
    %c0_i32 = arith.constant 0 : i32
    %c0_i32_0 = arith.constant 0 : i32
    %c0_i32_1 = arith.constant 0 : i32
    return %c0_i32, %c0_i32_0 : i32, i32
  }
  func.func @transform_5(%arg0: i32) -> (i32, i32) {
    %c0_i32 = arith.constant 0 : i32
    %c0_i32_0 = arith.constant 0 : i32
    return %arg0, %c0_i32 : i32, i32
  }
}

</mosaic_0001>

<llo_original>
// kernel: _fwd.1
$region0: #{_fwd.1}
  #allocation0 [shape = 'u32[]', space=smem, size = 0x4, offset = 0x4, fixed_abs, tag = 'smem constant byte address 0x4 - core index']
  #allocation1 [shape = 'u32[144,128]{1,0:T(1,128)}', space=vmem, size = 0x12000, scoped, tag = 'internal scratch']
  %s0 = inlined_call_operand.hbm [shape: bf16[8,128], index: 0, kind: input, shape index: {}]
  %s1 = inlined_call_operand.hbm [shape: bf16[128,256], index: 1, kind: input, shape index: {}]
  %s2 = inlined_call_operand.hbm [shape: bf16[2,256,256], index: 2, kind: input, shape index: {}]
  %s3 = inlined_call_operand.hbm [shape: bf16[256,128], index: 3, kind: input, shape index: {}]
  %s4 = inlined_call_operand.vmem [shape: f32[4,256], index: 4, kind: input, shape index: {}]
  %s5 = inlined_call_operand.hbm [shape: f32[8,128], index: 5, kind: output, shape index: {}]
  %s6 = sld [smem:[#allocation0]]
  $region46: #{_fwd.1} parent=0
    _
  %s8 = ssub.s32 1, %s6
  %s9 = scalar_select 0, %s8, %s6
  $region1: #{_fwd.1} parent=0
    #allocation2 [shape = 'u8[2048]{0}', space=vmem, size = 0x800, scoped, tag = 'input window, operand 0, single buffered']
    #allocation3 [shape = 's32[1]{0}', space=sflag, size = 0x4, scoped, tag = 'scoped memory for _fwd.1']
    #allocation4 [shape = 's32[1]{0}', space=sflag, size = 0x4, scoped, tag = 'scoped memory for _fwd.1']
    #allocation5 [shape = 'u8[65536]{0}', space=vmem, size = 0x10000, scoped, tag = 'input window, operand 1, single buffered']
    #allocation6 [shape = 's32[1]{0}', space=sflag, size = 0x4, scoped, tag = 'scoped memory for _fwd.1']
    #allocation7 [shape = 'u8[262144]{0}', space=vmem, size = 0x40000, scoped, tag = 'input window, operand 2, single buffered']
    #allocation8 [shape = 'u8[65536]{0}', space=vmem, size = 0x10000, scoped, tag = 'input window, operand 3, single buffered']
    #allocation9 [shape = 's32[1]{0}', space=sflag, size = 0x4, scoped, tag = 'scoped memory for _fwd.1']
    #allocation10 [shape = 'u8[4096]{0}', space=vmem, size = 0x1000, scoped, tag = 'output window, operand 0, single buffered']
    %10 = vsyncpa [#allocation3], 0
    %11 = vsyncpa [#allocation6], 0
    %12 = vsyncpa [#allocation9], 0
    %13 = vsyncpa [#allocation4], 0
    // Predicated region
    $region2: #{_fwd.1} parent=1 // pred_check
      _
    $region3: #{_fwd.1} parent=1 // pred_check_branch
      %15 = sbr.rel (0) target = $region5
    $region4: #{_fwd.1} parent=1 // pred_region
      %s17 = ssub.s32 64, 64
      %18 = vsyncadd [#allocation3], %s17
      %s20 = sshll.u32 [#allocation2], 4
      %s21 = int_to_ptr.vmem [resolvable:$true] %s20
      %23 = dma.hbm_to_vmem [thread:$0]  %s0, 64, %s21, [#allocation3]
    $region5: #{_fwd.1} parent=1 // pred_fallthru
      _
    // Predicated region
    $region6: #{_fwd.1} parent=1 // pred_check
      _
    $region7: #{_fwd.1} parent=1 // pred_check_branch
      %25 = sbr.rel (0) target = $region9
    $region8: #{_fwd.1} parent=1 // pred_region
      %s27 = ssub.s32 2048, 2048
      %28 = vsyncadd [#allocation6], %s27
      %s29 = sshll.u32 [#allocation5], 4
      %s30 = int_to_ptr.vmem [resolvable:$true] %s29
      %35 = dma.hbm_to_vmem [thread:$0]  %s1, 2048, %s30, [#allocation6], 128, 128, 8
    $region9: #{_fwd.1} parent=1 // pred_fallthru
      _
    // Predicated region
    $region10: #{_fwd.1} parent=1 // pred_check
      _
    $region11: #{_fwd.1} parent=1 // pred_check_branch
      %37 = sbr.rel (0) target = $region13
    $region12: #{_fwd.1} parent=1 // pred_region
      %s39 = ssub.s32 8192, 8192
      %40 = vsyncadd [#allocation6], %s39
      %s41 = sshll.u32 [#allocation7], 4
      %s42 = int_to_ptr.vmem [resolvable:$true] %s41
      %47 = dma.hbm_to_vmem [thread:$0]  %s2, 8192, %s42, [#allocation6], 128, 128, 8
    $region13: #{_fwd.1} parent=1 // pred_fallthru
      _
    // Predicated region
    $region14: #{_fwd.1} parent=1 // pred_check
      _
    $region15: #{_fwd.1} parent=1 // pred_check_branch
      %49 = sbr.rel (0) target = $region17
    $region16: #{_fwd.1} parent=1 // pred_region
      %s51 = ssub.s32 2048, 2048
      %52 = vsyncadd [#allocation9], %s51
      %s53 = sshll.u32 [#allocation8], 4
      %s54 = int_to_ptr.vmem [resolvable:$true] %s53
      %59 = dma.hbm_to_vmem [thread:$0]  %s3, 2048, %s54, [#allocation9], 64, 64, 4
    $region17: #{_fwd.1} parent=1 // pred_fallthru
      _
    // Predicated region
    $region18: #{_fwd.1} parent=1 // pred_check
      _
    $region19: #{_fwd.1} parent=1 // pred_check_branch
      %61 = sbr.rel (0) target = $region21
    $region20: #{_fwd.1} parent=1 // pred_region
      _
    $region21: #{_fwd.1} parent=1 // pred_fallthru
      _
    // Predicated region
    $region22: #{_fwd.1} parent=1 // pred_check
      _
    $region23: #{_fwd.1} parent=1 // pred_check_branch
      %63 = sbr.rel (0) target = $region25
    $region24: #{_fwd.1} parent=1 // pred_region
      %64 = dma.done [#allocation3], 64
    $region25: #{_fwd.1} parent=1 // pred_fallthru
      _
    // Predicated region
    $region26: #{_fwd.1} parent=1 // pred_check
      _
    $region27: #{_fwd.1} parent=1 // pred_check_branch
      %66 = sbr.rel (0) target = $region29
    $region28: #{_fwd.1} parent=1 // pred_region
      %67 = dma.done [#allocation6], 2048
    $region29: #{_fwd.1} parent=1 // pred_fallthru
      _
    // Predicated region
    $region30: #{_fwd.1} parent=1 // pred_check
      _
    $region31: #{_fwd.1} parent=1 // pred_check_branch
      %69 = sbr.rel (0) target = $region33
    $region32: #{_fwd.1} parent=1 // pred_region
      %70 = dma.done [#allocation6], 8192
    $region33: #{_fwd.1} parent=1 // pred_fallthru
      _
    // Predicated region
    $region34: #{_fwd.1} parent=1 // pred_check
      _
    $region35: #{_fwd.1} parent=1 // pred_check_branch
      %72 = sbr.rel (0) target = $region37
    $region36: #{_fwd.1} parent=1 // pred_region
      %73 = dma.done [#allocation9], 2048
    $region37: #{_fwd.1} parent=1 // pred_fallthru
      _
    %v75 = vld [vmem:[#allocation2] sm:$0xf]
    %v76 = vld [vmem:[#allocation5] sm:$0xff]
    %v77 = vld [vmem:[#allocation5 + $0x8] sm:$0xff]
    %v78 = vld [vmem:[#allocation5 + $0x10] sm:$0xff]
    %v79 = vld [vmem:[#allocation5 + $0x18] sm:$0xff]
    %v80 = vld [vmem:[#allocation5 + $0x20] sm:$0xff]
    %v81 = vld [vmem:[#allocation5 + $0x28] sm:$0xff]
    %v82 = vld [vmem:[#allocation5 + $0x30] sm:$0xff]
    %v83 = vld [vmem:[#allocation5 + $0x38] sm:$0xff]
    %v84 = vld [vmem:[#allocation5 + $0x40] sm:$0xff]
    %v85 = vld [vmem:[#allocation5 + $0x48] sm:$0xff]
    %v86 = vld [vmem:[#allocation5 + $0x50] sm:$0xff]
    %v87 = vld [vmem:[#allocation5 + $0x58] sm:$0xff]
    %v88 = vld [vmem:[#allocation5 + $0x60] sm:$0xff]
    %v89 = vld [vmem:[#allocation5 + $0x68] sm:$0xff]
    %v90 = vld [vmem:[#allocation5 + $0x70] sm:$0xff]
    %v91 = vld [vmem:[#allocation5 + $0x78] sm:$0xff]
    %v92 = vld [vmem:[%s4] ss:$4 sm:$0x3]
    %v94 = vlaneseq
    %v95 = vshrl.u32 %v94, 7
    %v96 = vsub.s32 0, %v95
    %v97 = vrot.slane %v92, %v96
    %v98 = vlaneseq
    %v99 = vshrl.u32 %v98, 7
    %v100 = vsub.s32 1, %v99
    %v101 = vrot.slane %v92, %v100
    %v120 = vunpack.c.l.b16 %v76
    %v121 = vunpack.c.h.b16 %v76
    %v122 = vunpack.c.l.b16 %v77
    %v123 = vunpack.c.h.b16 %v77
    %v124 = vunpack.c.l.b16 %v78
    %v125 = vunpack.c.h.b16 %v78
    %v126 = vunpack.c.l.b16 %v79
    %v127 = vunpack.c.h.b16 %v79
    %v128 = vunpack.c.l.b16 %v80
    %v129 = vunpack.c.h.b16 %v80
    %v130 = vunpack.c.l.b16 %v81
    %v131 = vunpack.c.h.b16 %v81
    %v132 = vunpack.c.l.b16 %v82
    %v133 = vunpack.c.h.b16 %v82
    %v134 = vunpack.c.l.b16 %v83
    %v135 = vunpack.c.h.b16 %v83
    %v136 = vunpack.c.l.b16 %v84
    %v137 = vunpack.c.h.b16 %v84
    %v138 = vunpack.c.l.b16 %v85
    %v139 = vunpack.c.h.b16 %v85
    %v140 = vunpack.c.l.b16 %v86
    %v141 = vunpack.c.h.b16 %v86
    %v142 = vunpack.c.l.b16 %v87
    %v143 = vunpack.c.h.b16 %v87
    %v144 = vunpack.c.l.b16 %v88
    %v145 = vunpack.c.h.b16 %v88
    %v146 = vunpack.c.l.b16 %v89
    %v147 = vunpack.c.h.b16 %v89
    %v148 = vunpack.c.l.b16 %v90
    %v149 = vunpack.c.h.b16 %v90
    %v150 = vunpack.c.l.b16 %v91
    %v151 = vunpack.c.h.b16 %v91
    %v152 = vpack.c.b16 %v122, %v120
    %v153 = vpack.c.b16 %v123, %v121
    %v154 = vpack.c.b16 %v126, %v124
    %v155 = vpack.c.b16 %v127, %v125
    %v156 = vpack.c.b16 %v130, %v128
    %v157 = vpack.c.b16 %v131, %v129
    %v158 = vpack.c.b16 %v134, %v132
    %v159 = vpack.c.b16 %v135, %v133
    %v160 = vpack.c.b16 %v138, %v136
    %v161 = vpack.c.b16 %v139, %v137
    %v162 = vpack.c.b16 %v142, %v140
    %v163 = vpack.c.b16 %v143, %v141
    %v164 = vpack.c.b16 %v146, %v144
    %v165 = vpack.c.b16 %v147, %v145
    %v166 = vpack.c.b16 %v150, %v148
    %v167 = vpack.c.b16 %v151, %v149
    %184 = vmatprep.subr.bf16.mxu0 %v153
    %185 = vmatpush1.bf16.msra.mxu0 %v152
    %186 = vmatprep.subr.bf16.mxu0 %v155
    %187 = vmatpush1.bf16.msra.mxu0 %v154
    %188 = vmatprep.subr.bf16.mxu0 %v157
    %189 = vmatpush1.bf16.msra.mxu0 %v156
    %190 = vmatprep.subr.bf16.mxu0 %v159
    %191 = vmatpush1.bf16.msra.mxu0 %v158
    %192 = vmatprep.subr.bf16.mxu0 %v161
    %193 = vmatpush1.bf16.msra.mxu0 %v160
    %194 = vmatprep.subr.bf16.mxu0 %v163
    %195 = vmatpush1.bf16.msra.mxu0 %v162
    %196 = vmatprep.subr.bf16.mxu0 %v165
    %197 = vmatpush1.bf16.msra.mxu0 %v164
    %198 = vmatprep.subr.bf16.mxu0 %v167
    %199 = vmatpush1.bf16.msra.mxu0 %v166
    %200 = vmatprep.subr.bf16.mxu0 0
    %201 = vmatpush1.bf16.msra.mxu0 0
    %202 = vmatprep.subr.bf16.mxu0 0
    %203 = vmatpush1.bf16.msra.mxu0 0
    %204 = vmatprep.subr.bf16.mxu0 0
    %205 = vmatpush1.bf16.msra.mxu0 0
    %206 = vmatprep.subr.bf16.mxu0 0
    %207 = vmatpush1.bf16.msra.mxu0 0
    %208 = vmatprep.subr.bf16.mxu0 0
    %209 = vmatpush1.bf16.msra.mxu0 0
    %210 = vmatprep.subr.bf16.mxu0 0
    %211 = vmatpush1.bf16.msra.mxu0 0
    %212 = vmatprep.subr.bf16.mxu0 0
    %213 = vmatpush1.bf16.msra.mxu0 0
    %214 = vmatprep.subr.bf16.mxu0 0
    %215 = vmatpush1.bf16.msra.mxu0 0
    %216 = vmatprep.mubr.bf16.mxu0 0
    %217 = vmatmul.mubr.bf16.gmra.mrb[0].mxu0 %v75
    %v218 = vpop.f32.mrb[0].mxu0
    %v219 = vadd.f32 %v97, %v218
    %v220 = vpop.f32.mrb[0].mxu0
    %v221 = vadd.f32 %v101, %v220
    %v222 = vpop.f32.mrb[0].mxu0
    %v223 = vpop.f32.mrb[0].mxu0
    %224 = vdwg.mxu0
    %v225 = vmax.f32 %v219, 0.0
    %v226 = vmax.f32 %v221, 0.0
    %v227 = vpack.c.bf16 %v225, %v225
    %v228 = vpack.c.bf16 %v226, %v226
    %v229 = vld [vmem:[#allocation7] sm:$0xff]
    %v230 = vld [vmem:[#allocation7 + $0x8] sm:$0xff]
    %v231 = vld [vmem:[#allocation7 + $0x10] sm:$0xff]
    %v232 = vld [vmem:[#allocation7 + $0x18] sm:$0xff]
    %v233 = vld [vmem:[#allocation7 + $0x20] sm:$0xff]
    %v234 = vld [vmem:[#allocation7 + $0x28] sm:$0xff]
    %v235 = vld [vmem:[#allocation7 + $0x30] sm:$0xff]
    %v236 = vld [vmem:[#allocation7 + $0x38] sm:$0xff]
    %v237 = vld [vmem:[#allocation7 + $0x40] sm:$0xff]
    %v238 = vld [vmem:[#allocation7 + $0x48] sm:$0xff]
    %v239 = vld [vmem:[#allocation7 + $0x50] sm:$0xff]
    %v240 = vld [vmem:[#allocation7 + $0x58] sm:$0xff]
    %v241 = vld [vmem:[#allocation7 + $0x60] sm:$0xff]
    %v242 = vld [vmem:[#allocation7 + $0x68] sm:$0xff]
    %v243 = vld [vmem:[#allocation7 + $0x70] sm:$0xff]
    %v244 = vld [vmem:[#allocation7 + $0x78] sm:$0xff]
    %v245 = vld [vmem:[#allocation7 + $0x80] sm:$0xff]
    %v246 = vld [vmem:[#allocation7 + $0x88] sm:$0xff]
    %v247 = vld [vmem:[#allocation7 + $0x90] sm:$0xff]
    %v248 = vld [vmem:[#allocation7 + $0x98] sm:$0xff]
    %v249 = vld [vmem:[#allocation7 + $0xa0] sm:$0xff]
    %v250 = vld [vmem:[#allocation7 + $0xa8] sm:$0xff]
    %v251 = vld [vmem:[#allocation7 + $0xb0] sm:$0xff]
    %v252 = vld [vmem:[#allocation7 + $0xb8] sm:$0xff]
    %v253 = vld [vmem:[#allocation7 + $0xc0] sm:$0xff]
    %v254 = vld [vmem:[#allocation7 + $0xc8] sm:$0xff]
    %v255 = vld [vmem:[#allocation7 + $0xd0] sm:$0xff]
    %v256 = vld [vmem:[#allocation7 + $0xd8] sm:$0xff]
    %v257 = vld [vmem:[#allocation7 + $0xe0] sm:$0xff]
    %v258 = vld [vmem:[#allocation7 + $0xe8] sm:$0xff]
    %v259 = vld [vmem:[#allocation7 + $0xf0] sm:$0xff]
    %v260 = vld [vmem:[#allocation7 + $0xf8] sm:$0xff]
    %s261 = scalar_lea.vmem %s4, 1
    %v262 = vld [vmem:[%s261] ss:$4 sm:$0x3]
    %v264 = vlaneseq
    %v265 = vshrl.u32 %v264, 7
    %v266 = vsub.s32 0, %v265
    %v267 = vrot.slane %v262, %v266
    %v268 = vlaneseq
    %v269 = vshrl.u32 %v268, 7
    %v270 = vsub.s32 1, %v269
    %v271 = vrot.slane %v262, %v270
    %v306 = vunpack.c.l.b16 %v229
    %v307 = vunpack.c.h.b16 %v229
    %v308 = vunpack.c.l.b16 %v230
    %v309 = vunpack.c.h.b16 %v230
    %v310 = vunpack.c.l.b16 %v231
    %v311 = vunpack.c.h.b16 %v231
    %v312 = vunpack.c.l.b16 %v232
    %v313 = vunpack.c.h.b16 %v232
    %v314 = vunpack.c.l.b16 %v233
    %v315 = vunpack.c.h.b16 %v233
    %v316 = vunpack.c.l.b16 %v234
    %v317 = vunpack.c.h.b16 %v234
    %v318 = vunpack.c.l.b16 %v235
    %v319 = vunpack.c.h.b16 %v235
    %v320 = vunpack.c.l.b16 %v236
    %v321 = vunpack.c.h.b16 %v236
    %v322 = vunpack.c.l.b16 %v237
    %v323 = vunpack.c.h.b16 %v237
    %v324 = vunpack.c.l.b16 %v238
    %v325 = vunpack.c.h.b16 %v238
    %v326 = vunpack.c.l.b16 %v239
    %v327 = vunpack.c.h.b16 %v239
    %v328 = vunpack.c.l.b16 %v240
    %v329 = vunpack.c.h.b16 %v240
    %v330 = vunpack.c.l.b16 %v241
    %v331 = vunpack.c.h.b16 %v241
    %v332 = vunpack.c.l.b16 %v242
    %v333 = vunpack.c.h.b16 %v242
    %v334 = vunpack.c.l.b16 %v243
    %v335 = vunpack.c.h.b16 %v243
    %v336 = vunpack.c.l.b16 %v244
    %v337 = vunpack.c.h.b16 %v244
    %v338 = vunpack.c.l.b16 %v245
    %v339 = vunpack.c.h.b16 %v245
    %v340 = vunpack.c.l.b16 %v246
    %v341 = vunpack.c.h.b16 %v246
    %v342 = vunpack.c.l.b16 %v247
    %v343 = vunpack.c.h.b16 %v247
    %v344 = vunpack.c.l.b16 %v248
    %v345 = vunpack.c.h.b16 %v248
    %v346 = vunpack.c.l.b16 %v249
    %v347 = vunpack.c.h.b16 %v249
    %v348 = vunpack.c.l.b16 %v250
    %v349 = vunpack.c.h.b16 %v250
    %v350 = vunpack.c.l.b16 %v251
    %v351 = vunpack.c.h.b16 %v251
    %v352 = vunpack.c.l.b16 %v252
    %v353 = vunpack.c.h.b16 %v252
    %v354 = vunpack.c.l.b16 %v253
    %v355 = vunpack.c.h.b16 %v253
    %v356 = vunpack.c.l.b16 %v254
    %v357 = vunpack.c.h.b16 %v254
    %v358 = vunpack.c.l.b16 %v255
    %v359 = vunpack.c.h.b16 %v255
    %v360 = vunpack.c.l.b16 %v256
    %v361 = vunpack.c.h.b16 %v256
    %v362 = vunpack.c.l.b16 %v257
    %v363 = vunpack.c.h.b16 %v257
    %v364 = vunpack.c.l.b16 %v258
    %v365 = vunpack.c.h.b16 %v258
    %v366 = vunpack.c.l.b16 %v259
    %v367 = vunpack.c.h.b16 %v259
    %v368 = vunpack.c.l.b16 %v260
    %v369 = vunpack.c.h.b16 %v260
    %v370 = vpack.c.b16 %v308, %v306
    %v371 = vpack.c.b16 %v309, %v307
    %v372 = vpack.c.b16 %v312, %v310
    %v373 = vpack.c.b16 %v313, %v311
    %v374 = vpack.c.b16 %v316, %v314
    %v375 = vpack.c.b16 %v317, %v315
    %v376 = vpack.c.b16 %v320, %v318
    %v377 = vpack.c.b16 %v321, %v319
    %v378 = vpack.c.b16 %v324, %v322
    %v379 = vpack.c.b16 %v325, %v323
    %v380 = vpack.c.b16 %v328, %v326
    %v381 = vpack.c.b16 %v329, %v327
    %v382 = vpack.c.b16 %v332, %v330
    %v383 = vpack.c.b16 %v333, %v331
    %v384 = vpack.c.b16 %v336, %v334
    %v385 = vpack.c.b16 %v337, %v335
    %v386 = vpack.c.b16 %v340, %v338
    %v387 = vpack.c.b16 %v341, %v339
    %v388 = vpack.c.b16 %v344, %v342
    %v389 = vpack.c.b16 %v345, %v343
    %v390 = vpack.c.b16 %v348, %v346
    %v391 = vpack.c.b16 %v349, %v347
    %v392 = vpack.c.b16 %v352, %v350
    %v393 = vpack.c.b16 %v353, %v351
    %v394 = vpack.c.b16 %v356, %v354
    %v395 = vpack.c.b16 %v357, %v355
    %v396 = vpack.c.b16 %v360, %v358
    %v397 = vpack.c.b16 %v361, %v359
    %v398 = vpack.c.b16 %v364, %v362
    %v399 = vpack.c.b16 %v365, %v363
    %v400 = vpack.c.b16 %v368, %v366
    %v401 = vpack.c.b16 %v369, %v367
    %434 = vmatprep.subr.bf16.mxu0 %v371
    %435 = vmatpush1.bf16.msra.mxu0 %v370
    %436 = vmatprep.subr.bf16.mxu0 %v373
    %437 = vmatpush1.bf16.msra.mxu0 %v372
    %438 = vmatprep.subr.bf16.mxu0 %v375
    %439 = vmatpush1.bf16.msra.mxu0 %v374
    %440 = vmatprep.subr.bf16.mxu0 %v377
    %441 = vmatpush1.bf16.msra.mxu0 %v376
    %442 = vmatprep.subr.bf16.mxu0 %v379
    %443 = vmatpush1.bf16.msra.mxu0 %v378
    %444 = vmatprep.subr.bf16.mxu0 %v381
    %445 = vmatpush1.bf16.msra.mxu0 %v380
    %446 = vmatprep.subr.bf16.mxu0 %v383
    %447 = vmatpush1.bf16.msra.mxu0 %v382
    %448 = vmatprep.subr.bf16.mxu0 %v385
    %449 = vmatpush1.bf16.msra.mxu0 %v384
    %450 = vmatprep.subr.bf16.mxu0 %v387
    %451 = vmatpush1.bf16.msra.mxu0 %v386
    %452 = vmatprep.subr.bf16.mxu0 %v389
    %453 = vmatpush1.bf16.msra.mxu0 %v388
    %454 = vmatprep.subr.bf16.mxu0 %v391
    %455 = vmatpush1.bf16.msra.mxu0 %v390
    %456 = vmatprep.subr.bf16.mxu0 %v393
    %457 = vmatpush1.bf16.msra.mxu0 %v392
    %458 = vmatprep.subr.bf16.mxu0 %v395
    %459 = vmatpush1.bf16.msra.mxu0 %v394
    %460 = vmatprep.subr.bf16.mxu0 %v397
    %461 = vmatpush1.bf16.msra.mxu0 %v396
    %462 = vmatprep.subr.bf16.mxu0 %v399
    %463 = vmatpush1.bf16.msra.mxu0 %v398
    %464 = vmatprep.subr.bf16.mxu0 %v401
    %465 = vmatpush1.bf16.msra.mxu0 %v400
    %466 = vmatprep.mubr.bf16.mxu0 %v228
    %467 = vmatmul.mubr.bf16.gmra.mrb[0].mxu0 %v227
    %v468 = vpop.f32.mrb[0].mxu0
    %v469 = vadd.f32 %v267, %v468
    %v470 = vpop.f32.mrb[0].mxu0
    %v471 = vadd.f32 %v271, %v470
    %v472 = vpop.f32.mrb[0].mxu0
    %v473 = vpop.f32.mrb[0].mxu0
    %474 = vdwg.mxu0
    %v475 = vmax.f32 %v469, 0.0
    %v476 = vmax.f32 %v471, 0.0
    %v477 = vpack.c.bf16 %v475, %v475
    %v478 = vpack.c.bf16 %v476, %v476
    %s479 = scalar_lea.vmem [#allocation7], 256
    %v480 = vld [vmem:[%s479] sm:$0xff]
    %v481 = vld [vmem:[%s479 + $0x8] sm:$0xff]
    %v482 = vld [vmem:[%s479 + $0x10] sm:$0xff]
    %v483 = vld [vmem:[%s479 + $0x18] sm:$0xff]
    %v484 = vld [vmem:[%s479 + $0x20] sm:$0xff]
    %v485 = vld [vmem:[%s479 + $0x28] sm:$0xff]
    %v486 = vld [vmem:[%s479 + $0x30] sm:$0xff]
    %v487 = vld [vmem:[%s479 + $0x38] sm:$0xff]
    %v488 = vld [vmem:[%s479 + $0x40] sm:$0xff]
    %v489 = vld [vmem:[%s479 + $0x48] sm:$0xff]
    %v490 = vld [vmem:[%s479 + $0x50] sm:$0xff]
    %v491 = vld [vmem:[%s479 + $0x58] sm:$0xff]
    %v492 = vld [vmem:[%s479 + $0x60] sm:$0xff]
    %v493 = vld [vmem:[%s479 + $0x68] sm:$0xff]
    %v494 = vld [vmem:[%s479 + $0x70] sm:$0xff]
    %v495 = vld [vmem:[%s479 + $0x78] sm:$0xff]
    %v496 = vld [vmem:[%s479 + $0x80] sm:$0xff]
    %v497 = vld [vmem:[%s479 + $0x88] sm:$0xff]
    %v498 = vld [vmem:[%s479 + $0x90] sm:$0xff]
    %v499 = vld [vmem:[%s479 + $0x98] sm:$0xff]
    %v500 = vld [vmem:[%s479 + $0xa0] sm:$0xff]
    %v501 = vld [vmem:[%s479 + $0xa8] sm:$0xff]
    %v502 = vld [vmem:[%s479 + $0xb0] sm:$0xff]
    %v503 = vld [vmem:[%s479 + $0xb8] sm:$0xff]
    %v504 = vld [vmem:[%s479 + $0xc0] sm:$0xff]
    %v505 = vld [vmem:[%s479 + $0xc8] sm:$0xff]
    %v506 = vld [vmem:[%s479 + $0xd0] sm:$0xff]
    %v507 = vld [vmem:[%s479 + $0xd8] sm:$0xff]
    %v508 = vld [vmem:[%s479 + $0xe0] sm:$0xff]
    %v509 = vld [vmem:[%s479 + $0xe8] sm:$0xff]
    %v510 = vld [vmem:[%s479 + $0xf0] sm:$0xff]
    %v511 = vld [vmem:[%s479 + $0xf8] sm:$0xff]
    %s512 = scalar_lea.vmem %s4, 2
    %v513 = vld [vmem:[%s512] ss:$4 sm:$0x3]
    %v515 = vlaneseq
    %v516 = vshrl.u32 %v515, 7
    %v517 = vsub.s32 0, %v516
    %v518 = vrot.slane %v513, %v517
    %v519 = vlaneseq
    %v520 = vshrl.u32 %v519, 7
    %v521 = vsub.s32 1, %v520
    %v522 = vrot.slane %v513, %v521
    %v557 = vunpack.c.l.b16 %v480
    %v558 = vunpack.c.h.b16 %v480
    %v559 = vunpack.c.l.b16 %v481
    %v560 = vunpack.c.h.b16 %v481
    %v561 = vunpack.c.l.b16 %v482
    %v562 = vunpack.c.h.b16 %v482
    %v563 = vunpack.c.l.b16 %v483
    %v564 = vunpack.c.h.b16 %v483
    %v565 = vunpack.c.l.b16 %v484
    %v566 = vunpack.c.h.b16 %v484
    %v567 = vunpack.c.l.b16 %v485
    %v568 = vunpack.c.h.b16 %v485
    %v569 = vunpack.c.l.b16 %v486
    %v570 = vunpack.c.h.b16 %v486
    %v571 = vunpack.c.l.b16 %v487
    %v572 = vunpack.c.h.b16 %v487
    %v573 = vunpack.c.l.b16 %v488
    %v574 = vunpack.c.h.b16 %v488
    %v575 = vunpack.c.l.b16 %v489
    %v576 = vunpack.c.h.b16 %v489
    %v577 = vunpack.c.l.b16 %v490
    %v578 = vunpack.c.h.b16 %v490
    %v579 = vunpack.c.l.b16 %v491
    %v580 = vunpack.c.h.b16 %v491
    %v581 = vunpack.c.l.b16 %v492
    %v582 = vunpack.c.h.b16 %v492
    %v583 = vunpack.c.l.b16 %v493
    %v584 = vunpack.c.h.b16 %v493
    %v585 = vunpack.c.l.b16 %v494
    %v586 = vunpack.c.h.b16 %v494
    %v587 = vunpack.c.l.b16 %v495
    %v588 = vunpack.c.h.b16 %v495
    %v589 = vunpack.c.l.b16 %v496
    %v590 = vunpack.c.h.b16 %v496
    %v591 = vunpack.c.l.b16 %v497
    %v592 = vunpack.c.h.b16 %v497
    %v593 = vunpack.c.l.b16 %v498
    %v594 = vunpack.c.h.b16 %v498
    %v595 = vunpack.c.l.b16 %v499
    %v596 = vunpack.c.h.b16 %v499
    %v597 = vunpack.c.l.b16 %v500
    %v598 = vunpack.c.h.b16 %v500
    %v599 = vunpack.c.l.b16 %v501
    %v600 = vunpack.c.h.b16 %v501
    %v601 = vunpack.c.l.b16 %v502
    %v602 = vunpack.c.h.b16 %v502
    %v603 = vunpack.c.l.b16 %v503
    %v604 = vunpack.c.h.b16 %v503
    %v605 = vunpack.c.l.b16 %v504
    %v606 = vunpack.c.h.b16 %v504
    %v607 = vunpack.c.l.b16 %v505
    %v608 = vunpack.c.h.b16 %v505
    %v609 = vunpack.c.l.b16 %v506
    %v610 = vunpack.c.h.b16 %v506
    %v611 = vunpack.c.l.b16 %v507
    %v612 = vunpack.c.h.b16 %v507
    %v613 = vunpack.c.l.b16 %v508
    %v614 = vunpack.c.h.b16 %v508
    %v615 = vunpack.c.l.b16 %v509
    %v616 = vunpack.c.h.b16 %v509
    %v617 = vunpack.c.l.b16 %v510
    %v618 = vunpack.c.h.b16 %v510
    %v619 = vunpack.c.l.b16 %v511
    %v620 = vunpack.c.h.b16 %v511
    %v621 = vpack.c.b16 %v559, %v557
    %v622 = vpack.c.b16 %v560, %v558
    %v623 = vpack.c.b16 %v563, %v561
    %v624 = vpack.c.b16 %v564, %v562
    %v625 = vpack.c.b16 %v567, %v565
    %v626 = vpack.c.b16 %v568, %v566
    %v627 = vpack.c.b16 %v571, %v569
    %v628 = vpack.c.b16 %v572, %v570
    %v629 = vpack.c.b16 %v575, %v573
    %v630 = vpack.c.b16 %v576, %v574
    %v631 = vpack.c.b16 %v579, %v577
    %v632 = vpack.c.b16 %v580, %v578
    %v633 = vpack.c.b16 %v583, %v581
    %v634 = vpack.c.b16 %v584, %v582
    %v635 = vpack.c.b16 %v587, %v585
    %v636 = vpack.c.b16 %v588, %v586
    %v637 = vpack.c.b16 %v591, %v589
    %v638 = vpack.c.b16 %v592, %v590
    %v639 = vpack.c.b16 %v595, %v593
    %v640 = vpack.c.b16 %v596, %v594
    %v641 = vpack.c.b16 %v599, %v597
    %v642 = vpack.c.b16 %v600, %v598
    %v643 = vpack.c.b16 %v603, %v601
    %v644 = vpack.c.b16 %v604, %v602
    %v645 = vpack.c.b16 %v607, %v605
    %v646 = vpack.c.b16 %v608, %v606
    %v647 = vpack.c.b16 %v611, %v609
    %v648 = vpack.c.b16 %v612, %v610
    %v649 = vpack.c.b16 %v615, %v613
    %v650 = vpack.c.b16 %v616, %v614
    %v651 = vpack.c.b16 %v619, %v617
    %v652 = vpack.c.b16 %v620, %v618
    %685 = vmatprep.subr.bf16.mxu0 %v622
    %686 = vmatpush1.bf16.msra.mxu0 %v621
    %687 = vmatprep.subr.bf16.mxu0 %v624
    %688 = vmatpush1.bf16.msra.mxu0 %v623
    %689 = vmatprep.subr.bf16.mxu0 %v626
    %690 = vmatpush1.bf16.msra.mxu0 %v625
    %691 = vmatprep.subr.bf16.mxu0 %v628
    %692 = vmatpush1.bf16.msra.mxu0 %v627
    %693 = vmatprep.subr.bf16.mxu0 %v630
    %694 = vmatpush1.bf16.msra.mxu0 %v629
    %695 = vmatprep.subr.bf16.mxu0 %v632
    %696 = vmatpush1.bf16.msra.mxu0 %v631
    %697 = vmatprep.subr.bf16.mxu0 %v634
    %698 = vmatpush1.bf16.msra.mxu0 %v633
    %699 = vmatprep.subr.bf16.mxu0 %v636
    %700 = vmatpush1.bf16.msra.mxu0 %v635
    %701 = vmatprep.subr.bf16.mxu0 %v638
    %702 = vmatpush1.bf16.msra.mxu0 %v637
    %703 = vmatprep.subr.bf16.mxu0 %v640
    %704 = vmatpush1.bf16.msra.mxu0 %v639
    %705 = vmatprep.subr.bf16.mxu0 %v642
    %706 = vmatpush1.bf16.msra.mxu0 %v641
    %707 = vmatprep.subr.bf16.mxu0 %v644
    %708 = vmatpush1.bf16.msra.mxu0 %v643
    %709 = vmatprep.subr.bf16.mxu0 %v646
    %710 = vmatpush1.bf16.msra.mxu0 %v645
    %711 = vmatprep.subr.bf16.mxu0 %v648
    %712 = vmatpush1.bf16.msra.mxu0 %v647
    %713 = vmatprep.subr.bf16.mxu0 %v650
    %714 = vmatpush1.bf16.msra.mxu0 %v649
    %715 = vmatprep.subr.bf16.mxu0 %v652
    %716 = vmatpush1.bf16.msra.mxu0 %v651
    %717 = vmatprep.mubr.bf16.mxu0 %v478
    %718 = vmatmul.mubr.bf16.gmra.mrb[0].mxu0 %v477
    %v719 = vpop.f32.mrb[0].mxu0
    %v720 = vadd.f32 %v518, %v719
    %v721 = vpop.f32.mrb[0].mxu0
    %v722 = vadd.f32 %v522, %v721
    %v723 = vpop.f32.mrb[0].mxu0
    %v724 = vpop.f32.mrb[0].mxu0
    %725 = vdwg.mxu0
    %v726 = vmax.f32 %v720, 0.0
    %v727 = vmax.f32 %v722, 0.0
    %v728 = vpack.c.bf16 %v726, %v726
    %v729 = vpack.c.bf16 %v727, %v727
    %v730 = vld [vmem:[#allocation8] sm:$0xf]
    %v731 = vld [vmem:[#allocation8 + $0x4] sm:$0xf]
    %v732 = vld [vmem:[#allocation8 + $0x8] sm:$0xf]
    %v733 = vld [vmem:[#allocation8 + $0xc] sm:$0xf]
    %v734 = vld [vmem:[#allocation8 + $0x10] sm:$0xf]
    %v735 = vld [vmem:[#allocation8 + $0x14] sm:$0xf]
    %v736 = vld [vmem:[#allocation8 + $0x18] sm:$0xf]
    %v737 = vld [vmem:[#allocation8 + $0x1c] sm:$0xf]
    %v738 = vld [vmem:[#allocation8 + $0x20] sm:$0xf]
    %v739 = vld [vmem:[#allocation8 + $0x24] sm:$0xf]
    %v740 = vld [vmem:[#allocation8 + $0x28] sm:$0xf]
    %v741 = vld [vmem:[#allocation8 + $0x2c] sm:$0xf]
    %v742 = vld [vmem:[#allocation8 + $0x30] sm:$0xf]
    %v743 = vld [vmem:[#allocation8 + $0x34] sm:$0xf]
    %v744 = vld [vmem:[#allocation8 + $0x38] sm:$0xf]
    %v745 = vld [vmem:[#allocation8 + $0x3c] sm:$0xf]
    %v746 = vld [vmem:[#allocation8 + $0x40] sm:$0xf]
    %v747 = vld [vmem:[#allocation8 + $0x44] sm:$0xf]
    %v748 = vld [vmem:[#allocation8 + $0x48] sm:$0xf]
    %v749 = vld [vmem:[#allocation8 + $0x4c] sm:$0xf]
    %v750 = vld [vmem:[#allocation8 + $0x50] sm:$0xf]
    %v751 = vld [vmem:[#allocation8 + $0x54] sm:$0xf]
    %v752 = vld [vmem:[#allocation8 + $0x58] sm:$0xf]
    %v753 = vld [vmem:[#allocation8 + $0x5c] sm:$0xf]
    %v754 = vld [vmem:[#allocation8 + $0x60] sm:$0xf]
    %v755 = vld [vmem:[#allocation8 + $0x64] sm:$0xf]
    %v756 = vld [vmem:[#allocation8 + $0x68] sm:$0xf]
    %v757 = vld [vmem:[#allocation8 + $0x6c] sm:$0xf]
    %v758 = vld [vmem:[#allocation8 + $0x70] sm:$0xf]
    %v759 = vld [vmem:[#allocation8 + $0x74] sm:$0xf]
    %v760 = vld [vmem:[#allocation8 + $0x78] sm:$0xf]
    %v761 = vld [vmem:[#allocation8 + $0x7c] sm:$0xf]
    %v762 = vld [vmem:[%s4 + $0x3] sm:$0x1]
    %v763 = vlaneseq
    %v764 = vshrl.u32 %v763, 7
    %v765 = vsub.s32 0, %v764
    %v766 = vrot.slane %v762, %v765
    %v799 = vunpack.c.l.b16 %v730
    %v800 = vunpack.c.l.b16 %v731
    %v801 = vunpack.c.l.b16 %v732
    %v802 = vunpack.c.l.b16 %v733
    %v803 = vunpack.c.l.b16 %v734
    %v804 = vunpack.c.l.b16 %v735
    %v805 = vunpack.c.l.b16 %v736
    %v806 = vunpack.c.l.b16 %v737
    %v807 = vunpack.c.l.b16 %v738
    %v808 = vunpack.c.l.b16 %v739
    %v809 = vunpack.c.l.b16 %v740
    %v810 = vunpack.c.l.b16 %v741
    %v811 = vunpack.c.l.b16 %v742
    %v812 = vunpack.c.l.b16 %v743
    %v813 = vunpack.c.l.b16 %v744
    %v814 = vunpack.c.l.b16 %v745
    %v815 = vunpack.c.l.b16 %v746
    %v816 = vunpack.c.l.b16 %v747
    %v817 = vunpack.c.l.b16 %v748
    %v818 = vunpack.c.l.b16 %v749
    %v819 = vunpack.c.l.b16 %v750
    %v820 = vunpack.c.l.b16 %v751
    %v821 = vunpack.c.l.b16 %v752
    %v822 = vunpack.c.l.b16 %v753
    %v823 = vunpack.c.l.b16 %v754
    %v824 = vunpack.c.l.b16 %v755
    %v825 = vunpack.c.l.b16 %v756
    %v826 = vunpack.c.l.b16 %v757
    %v827 = vunpack.c.l.b16 %v758
    %v828 = vunpack.c.l.b16 %v759
    %v829 = vunpack.c.l.b16 %v760
    %v830 = vunpack.c.l.b16 %v761
    %v831 = vpack.c.b16 %v800, %v799
    %v832 = vpack.c.b16 %v802, %v801
    %v833 = vpack.c.b16 %v804, %v803
    %v834 = vpack.c.b16 %v806, %v805
    %v835 = vpack.c.b16 %v808, %v807
    %v836 = vpack.c.b16 %v810, %v809
    %v837 = vpack.c.b16 %v812, %v811
    %v838 = vpack.c.b16 %v814, %v813
    %v839 = vpack.c.b16 %v816, %v815
    %v840 = vpack.c.b16 %v818, %v817
    %v841 = vpack.c.b16 %v820, %v819
    %v842 = vpack.c.b16 %v822, %v821
    %v843 = vpack.c.b16 %v824, %v823
    %v844 = vpack.c.b16 %v826, %v825
    %v845 = vpack.c.b16 %v828, %v827
    %v846 = vpack.c.b16 %v830, %v829
    %863 = vmatprep.subr.bf16.mxu0 0
    %864 = vmatpush1.bf16.msra.mxu0 %v831
    %865 = vmatprep.subr.bf16.mxu0 0
    %866 = vmatpush1.bf16.msra.mxu0 %v832
    %867 = vmatprep.subr.bf16.mxu0 0
    %868 = vmatpush1.bf16.msra.mxu0 %v833
    %869 = vmatprep.subr.bf16.mxu0 0
    %870 = vmatpush1.bf16.msra.mxu0 %v834
    %871 = vmatprep.subr.bf16.mxu0 0
    %872 = vmatpush1.bf16.msra.mxu0 %v835
    %873 = vmatprep.subr.bf16.mxu0 0
    %874 = vmatpush1.bf16.msra.mxu0 %v836
    %875 = vmatprep.subr.bf16.mxu0 0
    %876 = vmatpush1.bf16.msra.mxu0 %v837
    %877 = vmatprep.subr.bf16.mxu0 0
    %878 = vmatpush1.bf16.msra.mxu0 %v838
    %879 = vmatprep.subr.bf16.mxu0 0
    %880 = vmatpush1.bf16.msra.mxu0 %v839
    %881 = vmatprep.subr.bf16.mxu0 0
    %882 = vmatpush1.bf16.msra.mxu0 %v840
    %883 = vmatprep.subr.bf16.mxu0 0
    %884 = vmatpush1.bf16.msra.mxu0 %v841
    %885 = vmatprep.subr.bf16.mxu0 0
    %886 = vmatpush1.bf16.msra.mxu0 %v842
    %887 = vmatprep.subr.bf16.mxu0 0
    %888 = vmatpush1.bf16.msra.mxu0 %v843
    %889 = vmatprep.subr.bf16.mxu0 0
    %890 = vmatpush1.bf16.msra.mxu0 %v844
    %891 = vmatprep.subr.bf16.mxu0 0
    %892 = vmatpush1.bf16.msra.mxu0 %v845
    %893 = vmatprep.subr.bf16.mxu0 0
    %894 = vmatpush1.bf16.msra.mxu0 %v846
    %895 = vmatprep.mubr.bf16.mxu0 %v729
    %896 = vmatmul.mubr.bf16.gmra.mrb[0].mxu0 %v728
    %v897 = vpop.f32.mrb[0].mxu0
    %v898 = vadd.f32 %v766, %v897
    %v899 = vpop.f32.mrb[0].mxu0
    %v900 = vpop.f32.mrb[0].mxu0
    %v901 = vpop.f32.mrb[0].mxu0
    %902 = vdwg.mxu0
    %v903 = vtanh.pop %v898
    %904 = vst [vmem:[#allocation10] sm:$0xff] %v903
    // Predicated region
    $region38: #{_fwd.1} parent=1 // pred_check
      _
    $region39: #{_fwd.1} parent=1 // pred_check_branch
      %906 = sbr.rel (0) target = $region41
    $region40: #{_fwd.1} parent=1 // pred_region
      %s908 = ssub.s32 128, 128
      %909 = vsyncadd [#allocation4], %s908
      %s911 = sshll.u32 [#allocation10], 4
      %s912 = int_to_ptr.vmem [resolvable:$true] %s911
      %914 = dma.vmem_to_hbm [thread:$0]  %s912, 128, %s5, [#allocation4]
    $region41: #{_fwd.1} parent=1 // pred_fallthru
      _
    // Predicated region
    $region42: #{_fwd.1} parent=1 // pred_check
      _
    $region43: #{_fwd.1} parent=1 // pred_check_branch
      %916 = sbr.rel (0) target = $region45
    $region44: #{_fwd.1} parent=1 // pred_region
      %917 = dma.done [#allocation4], 128
    $region45: #{_fwd.1} parent=1 // pred_fallthru
      _
    %918 = vsyncpa [#allocation3], 1
    %919 = vsyncpa [#allocation6], 1
    %920 = vsyncpa [#allocation9], 1
    %921 = vsyncpa [#allocation4], 1

</llo_original>
